<compile_context>
chip_gen: v5e
topology: v5e:2x2
jax: 0.10.0
libtpu: 0.0.40
codegen_flags: <defaults>
</compile_context>

<pallas_src>
import functools
import operator

import jax
import jax.numpy as jnp
from jax.experimental import pallas as pl
from jax.experimental.pallas import tpu as pltpu


def _prod(xs):
    return functools.reduce(operator.mul, xs, 1)


def _pad_up(v, m):
    return -(-v // m) * m


def _expand_kernel(x_ref, o_ref):
    # x block is (bp, a_in, b_in) with a_in/b_in equal to the output block dims
    # (kept axes) or 1 (broadcast axes).  When the shapes already match this is
    # a plain copy, so the kernel stays pure DMA / store-slot bound.
    o_ref[...] = jnp.broadcast_to(x_ref[...], o_ref.shape)


def _resolve_shapes(x_shape, new_shape):
    """Apply torch.expand rules (-1 keeps size; size-1 dims broadcast)."""
    new_shape = tuple(int(s) for s in new_shape)
    if len(new_shape) < len(x_shape):
        raise ValueError("new_shape must have at least as many dims as x")
    pad = len(new_shape) - len(x_shape)
    in_shape = (1,) * pad + tuple(int(s) for s in x_shape)
    out_shape = []
    for ax, (xs, ns) in enumerate(zip(in_shape, new_shape)):
        if ns == -1:
            if ax < pad:
                raise ValueError("added leading dims of expand() cannot be -1")
            out_shape.append(xs)
        elif xs == ns or xs == 1:
            out_shape.append(ns)
        else:
            raise ValueError(f"cannot expand dim of size {xs} to {ns}")
    return in_shape, tuple(out_shape)


def _collapse(in_shape, out_shape):
    """Drop size-1 output dims; merge adjacent dims with equal broadcast status.

    Returns [(in_size, out_size, kept)] from most- to least-significant.
    """
    dims = []
    for i, o in zip(in_shape, out_shape):
        if o == 1:
            continue  # contributes nothing to either layout
        kept = (i == o)
        if dims and dims[-1][2] == kept:
            pi, po, _ = dims[-1]
            dims[-1] = (pi * i, po * o, kept)
        else:
            dims.append((i, o, kept))
    return dims


def expand_after_op(x, new_shape, *, block_bytes=2 * 1024 * 1024):
    """Pallas TPU implementation of torch.clone(x).expand(new_shape)."""
    in_shape, out_shape = _resolve_shapes(x.shape, new_shape)
    dims = _collapse(in_shape, out_shape)

    # Single collapsed dim (pure clone / scalar broadcast): give it a dense
    # (rows, 128) trailing view when the size allows it.
    if len(dims) == 1 and dims[0][1] % 128 == 0 and dims[0][1] >= 1024:
        i0, o0, k0 = dims[0]
        if k0:
            dims = [(o0 // 128, o0 // 128, True), (128, 128, True)]
        else:
            dims = [(1, o0 // 128, False), (1, 128, False)]
    while len(dims) < 2:
        dims = [(1, 1, True)] + dims

    # Canonical 3-D views:  out = (P, A, B),  in = (P_in, A_in, B_in).
    *lead, (a_in, a_out, a_kept), (b_in, b_out, b_kept) = dims
    p_out = _prod(d[1] for d in lead)
    p_in = _prod(d[0] for d in lead)
    lead_all_kept = all(d[2] for d in lead)

    elem = jnp.dtype(x.dtype).itemsize
    blk_elems = max(1024, block_bytes // elem)

    # --- output block (bp, ba, bb): a few MiB, always legal w.r.t. (8,128) ---
    full_phys = _pad_up(a_out, 8) * _pad_up(b_out, 128)
    if a_out * b_out <= blk_elems and full_phys <= 2 * blk_elems:
        ba, bb = a_out, b_out                                  # full trailing slab
    else:
        if 8 * b_out <= blk_elems:
            bb = b_out                                         # == full dim
        else:
            bb = max(128, (blk_elems // 8 // 128) * 128)       # multiple of 128
        ba = min(a_out, max(8, (blk_elems // bb // 8) * 8))    # mult of 8 or == A

    ba_in = ba if a_kept else 1
    bb_in = bb if b_kept else 1

    # Leading-axis rows per block: only when the whole trailing slab fits and
    # the leading index map is the identity; cap by the *physical* (8,128)-
    # padded footprint of both the input and output blocks.
    if ba == a_out and bb == b_out and lead_all_kept and p_out > 1:
        out_row_phys = _pad_up(ba, 8) * _pad_up(bb, 128)
        in_row_phys = _pad_up(ba_in, 8) * _pad_up(bb_in, 128)
        row_phys = max(out_row_phys, in_row_phys, 1)
        bp = min(p_out, max(1, blk_elems // row_phys))
    else:
        bp = 1

    grid = (pl.cdiv(p_out, bp), pl.cdiv(a_out, ba), pl.cdiv(b_out, bb))

    # --- index maps ----------------------------------------------------------
    if lead_all_kept:
        def in_p(p):
            return p
    else:
        out_sizes = [d[1] for d in lead]
        in_sizes = [d[0] for d in lead]
        kept_flags = [d[2] for d in lead]
        out_strides, in_strides = [], []
        so = si = 1
        for osz, isz in zip(reversed(out_sizes), reversed(in_sizes)):
            out_strides.append(so)
            in_strides.append(si)
            so *= osz
            si *= isz
        out_strides, in_strides = out_strides[::-1], in_strides[::-1]

        def in_p(p):
            idx = 0
            for osz, ost, ist, kept in zip(out_sizes, out_strides, in_strides,
                                           kept_flags):
                if kept:
                    idx = idx + ((p // ost) % osz) * ist
            return idx

    def out_index_map(p, a, b):
        return (p, a, b)

    def in_index_map(p, a, b):
        # Broadcast axes always read block 0, so the input block index does not
        # change across those grid steps and Pallas skips re-DMAing the input.
        return (in_p(p), a if a_kept else 0, b if b_kept else 0)

    x3 = jnp.reshape(x, (p_in, a_in, b_in))

    out3 = pl.pallas_call(
        _expand_kernel,
        out_shape=jax.ShapeDtypeStruct((p_out, a_out, b_out), x.dtype),
        grid_spec=pltpu.PrefetchScalarGridSpec(
            num_scalar_prefetch=0,
            grid=grid,
            in_specs=[pl.BlockSpec((bp, ba_in, bb_in), in_index_map)],
            out_specs=pl.BlockSpec((bp, ba, bb), out_index_map),
        ),
        compiler_params=pltpu.CompilerParams(
            dimension_semantics=("parallel", "parallel", "parallel"),
        ),
    )(x3)

    return jnp.reshape(out3, out_shape)


if __name__ == "__main__":
    key = jax.random.PRNGKey(0)

    # NCHW-ish tensor with a singleton channel dim expanded to 4 channels.
    # Canonical view: out (2, 4, 256), in (2, 1, 256) -> lane-dense, 1 grid step.
    x = jax.random.normal(key, (2, 1, 16, 16), dtype=jnp.float32)
    new_shape = (2, 4, 16, 16)
    out = jax.block_until_ready(expand_after_op(x, new_shape))
    ref = jnp.broadcast_to(x, new_shape)
    assert out.shape == new_shape and out.dtype == x.dtype
    assert bool(jnp.array_equal(out, ref))

    # -1 entry + added leading dim.
    y = jax.random.normal(jax.random.PRNGKey(1), (1, 8, 128), dtype=jnp.float32)
    out2 = jax.block_until_ready(expand_after_op(y, (4, -1, 128)))
    assert bool(jnp.array_equal(out2, jnp.broadcast_to(y, (4, 8, 128))))

    # Interleaved broadcast dims (exercises the arithmetic leading index map).
    z = jax.random.normal(jax.random.PRNGKey(2), (2, 1, 3, 1, 8), dtype=jnp.float32)
    out3 = jax.block_until_ready(expand_after_op(z, (2, 5, 3, 4, 8)))
    assert bool(jnp.array_equal(out3, jnp.broadcast_to(z, (2, 5, 3, 4, 8))))

    print("KERNEL_OK")
</pallas_src>

<mosaic_0001>
module attributes {stable_mosaic.version = 11 : i64} {
  func.func @_expand_kernel(%arg0: i32, %arg1: i32, %arg2: i32, %arg3: memref<2x1x256xf32, #tpu.memory_space<vmem>>, %arg4: memref<2x4x256xf32, #tpu.memory_space<vmem>>) attributes {dimension_semantics = [#tpu.dimension_semantics<parallel>, #tpu.dimension_semantics<parallel>, #tpu.dimension_semantics<parallel>], iteration_bounds = array<i64: 1, 1, 1>, scalar_prefetch = 0 : i64, scratch_operands = 0 : i64, tpu.core_type = #tpu.core_type<tc>, window_params = [{transform_indices = @transform_0, window_bounds = array<i64: 2, 1, 256>}, {transform_indices = @transform_1, window_bounds = array<i64: 2, 4, 256>}]} {
    %c0 = arith.constant 0 : index
    %c0_0 = arith.constant 0 : index
    %c0_1 = arith.constant 0 : index
    %0 = vector.load %arg3[%c0, %c0_0, %c0_1] : memref<2x1x256xf32, #tpu.memory_space<vmem>>, vector<2x1x256xf32>
    %1 = vector.shape_cast %0 : vector<2x1x256xf32> to vector<2x1x256xf32>
    %2 = vector.broadcast %1 : vector<2x1x256xf32> to vector<2x4x256xf32>
    %c0_2 = arith.constant 0 : index
    %c0_3 = arith.constant 0 : index
    %c0_4 = arith.constant 0 : index
    %3 = vector.load %arg4[%c0_2, %c0_3, %c0_4] : memref<2x4x256xf32, #tpu.memory_space<vmem>>, vector<2x4x256xf32>
    tpu.vector_store %arg4[%c0_2, %c0_3, %c0_4], %2 {strides = array<i32>} : memref<2x4x256xf32, #tpu.memory_space<vmem>>, vector<2x4x256xf32>,
    return
  }
  func.func @transform_0(%arg0: i32, %arg1: i32, %arg2: i32) -> (i32, i32, i32) {
    %c0_i32 = arith.constant 0 : i32
    %c0_i32_0 = arith.constant 0 : i32
    return %arg0, %c0_i32, %arg2 : i32, i32, i32
  }
  func.func @transform_1(%arg0: i32, %arg1: i32, %arg2: i32) -> (i32, i32, i32) {
    %c0_i32 = arith.constant 0 : i32
    return %arg0, %arg1, %arg2 : i32, i32, i32
  }
}

</mosaic_0001>

<llo_original>
// kernel: tpu_custom_call.1
$region0: #{tpu_custom_call.1}
  #allocation0 [shape = 'u32[]', space=smem, size = 0x4, offset = 0x4, fixed_abs, tag = 'smem constant byte address 0x4 - core index']
  #allocation1 [shape = 'u32[72,128]{1,0:T(1,128)}', space=vmem, size = 0x9000, scoped, tag = 'internal scratch']
  %s0 = inlined_call_operand.hbm [shape: f32[2,1,256], index: 0, kind: input, shape index: {}]
  %s1 = inlined_call_operand.hbm [shape: f32[2,4,256], index: 1, kind: output, shape index: {}]
  %s2 = sld [smem:[#allocation0]]
  $region18: #{tpu_custom_call.1} parent=0
    _
  %s4 = ssub.s32 1, %s2
  %s5 = scalar_select 0, %s4, %s2
  $region1: #{tpu_custom_call.1} parent=0
    #allocation2 [shape = 'u8[2048]{0}', space=vmem, size = 0x800, scoped, tag = 'input window, operand 0, single buffered']
    #allocation3 [shape = 's32[1]{0}', space=sflag, size = 0x4, scoped, tag = 'scoped memory for tpu_custom_call.1']
    #allocation4 [shape = 's32[1]{0}', space=sflag, size = 0x4, scoped, tag = 'scoped memory for tpu_custom_call.1']
    #allocation5 [shape = 'u8[8192]{0}', space=vmem, size = 0x2000, scoped, tag = 'output window, operand 0, single buffered']
    %6 = vsyncpa [#allocation3], 0
    %7 = vsyncpa [#allocation4], 0
    // Predicated region
    $region2: #{tpu_custom_call.1} parent=1 // pred_check
      _
    $region3: #{tpu_custom_call.1} parent=1 // pred_check_branch
      %9 = sbr.rel (0) target = $region5
    $region4: #{tpu_custom_call.1} parent=1 // pred_region
      %11 = vsyncadd [#allocation3], 0
      %s12 = sshll.u32 %s0, 4
      %s13 = int_to_ptr.hbm [resolvable:$true] %s12
      %s14 = sshll.u32 [#allocation2], 4
      %s15 = int_to_ptr.vmem [resolvable:$true] %s14
      %20 = dma.hbm_to_vmem [thread:$0]  %s13, 64, %s15, [#allocation3], 32, 32, 2
    $region5: #{tpu_custom_call.1} parent=1 // pred_fallthru
      _
    // Predicated region
    $region6: #{tpu_custom_call.1} parent=1 // pred_check
      _
    $region7: #{tpu_custom_call.1} parent=1 // pred_check_branch
      %22 = sbr.rel (0) target = $region9
    $region8: #{tpu_custom_call.1} parent=1 // pred_region
      %24 = dma.done [#allocation3], 64
    $region9: #{tpu_custom_call.1} parent=1 // pred_fallthru
      _
    %v25 = vld [vmem:[#allocation2] sm:$0x3]
    %v26 = vld [vmem:[#allocation2 + $0x2] sm:$0x3]
    %v29 = vperm.slane %v25, 0
    %v30 = vperm.slane %v25, 1
    %v31 = vperm.slane %v26, 0
    %v32 = vperm.slane %v26, 1
    %v33 = vrot.slane %v30, 4
    %v34 = vrot.slane %v32, 4
    %vm35 = vcmask 1043456
    %v36 = vsel %vm35, %v29, %v33
    %v37 = vsel %vm35, %v31, %v34
    %40 = vst [vmem:[#allocation5] sm:$0xff] %v36
    %41 = vst [vmem:[#allocation5 + $0x8] sm:$0xff] %v37
    // Predicated region
    $region10: #{tpu_custom_call.1} parent=1 // pred_check
      _
    $region11: #{tpu_custom_call.1} parent=1 // pred_check_branch
      %43 = sbr.rel (0) target = $region13
    $region12: #{tpu_custom_call.1} parent=1 // pred_region
      %45 = vsyncadd [#allocation4], 0
      %s46 = sshll.u32 [#allocation5], 4
      %s47 = int_to_ptr.vmem [resolvable:$true] %s46
      %s48 = sshll.u32 %s1, 4
      %s49 = int_to_ptr.hbm [resolvable:$true] %s48
      %54 = dma.vmem_to_hbm [thread:$0]  %s47, 256, %s49, [#allocation4], 128, 128, 8
    $region13: #{tpu_custom_call.1} parent=1 // pred_fallthru
      _
    // Predicated region
    $region14: #{tpu_custom_call.1} parent=1 // pred_check
      _
    $region15: #{tpu_custom_call.1} parent=1 // pred_check_branch
      %56 = sbr.rel (0) target = $region17
    $region16: #{tpu_custom_call.1} parent=1 // pred_region
      %58 = dma.done [#allocation4], 256
    $region17: #{tpu_custom_call.1} parent=1 // pred_fallthru
      _
    %59 = vsyncpa [#allocation3], 1
    %60 = vsyncpa [#allocation4], 1

</llo_original>
